<compile_context>
chip_gen: v7x
topology: tpu7x:2x2x1
jax: 0.10.0
libtpu: 0.0.40
codegen_flags: <defaults>
</compile_context>

<pallas_src>
import jax
import jax.numpy as jnp
from jax.experimental import pallas as pl
from jax.experimental.pallas import tpu as pltpu


def _conv1d_k3_strided_kernel(x_ref, w_ref, b_ref, mask_ref, o_ref):
    # x_ref:    (M_TILE, rate*C_in)   M_TILE = bn_tile * t_out (block starts at j == 0)
    # w_ref:    (rate*C_in, 2*C_out)  folded weight [A | B] (see _build_folded_weight)
    # b_ref:    (1, C_out)            f32 bias
    # mask_ref: (M_TILE, 1)           f32, 0.0 where local output index j == 0 else 1.0
    # o_ref:    (M_TILE, C_out)
    c_out = o_ref.shape[1]

    # Single fused (M, rate*C) x (rate*C, 2*C_out) matmul on the MXU, f32 accumulation.
    ab = jnp.dot(x_ref[...], w_ref[...], preferred_element_type=jnp.float32)
    part_a = ab[:, :c_out]          # w1*x[rate*j] + w2*x[rate*j+1]
    part_b = ab[:, c_out:]          # w0*x[rate*j + rate - 1]

    # Tap k=0 needs w0*x[rate*j - 1] == part_b of the PREVIOUS output row: a one-row
    # sublane roll (XLU slot, free next to the MXU).  Multiplying by the resident mask
    # zeroes it at local j == 0, which implements the conv's left zero padding (and
    # also kills the roll's wraparound at block row 0).
    b_prev = pltpu.roll(part_b, shift=1, axis=0)
    out = part_a + b_prev * mask_ref[...] + b_ref[...]
    o_ref[...] = out.astype(o_ref.dtype)


def _build_folded_weight(weight, rate):
    """(C_out, C_in, 3) PyTorch Conv1d weight -> (rate*C_in, 2*C_out) folded matrix.

    Row block p (multiplying input frame x[rate*j + p]) contributes:
      columns [0:C_out]       : tap k=1 (p == 0) and tap k=2 (p == 1)      -> "A"
      columns [C_out:2*C_out] : tap k=0 applied to the row's LAST frame    -> "B"
    so   A[j] = w1*x[rate*j] + w2*x[rate*j+1]
         B[j] = w0*x[rate*j + rate - 1]     and   B[j-1] == w0*x[rate*j - 1].
    """
    c_out, c_in, k = weight.shape
    assert k == 3
    w0 = weight[:, :, 0].T          # (C_in, C_out)
    w1 = weight[:, :, 1].T
    w2 = weight[:, :, 2].T
    zero = jnp.zeros_like(w0)
    blocks = []
    for p in range(rate):
        a_part = w1 if p == 0 else (w2 if p == 1 else zero)
        b_part = w0 if p == rate - 1 else zero
        blocks.append(jnp.concatenate([a_part, b_part], axis=1))
    return jnp.concatenate(blocks, axis=0)      # (rate*C_in, 2*C_out)


def _pick_bn_tile(bn, t_out, in_row_bytes, *, max_block_bytes=4 << 20):
    """How many (b*n) rows per grid step.

    Constraints / preferences:
      * block sublane dim (bn_tile*t_out) must be a multiple of 8 OR bn_tile == bn;
      * size the input block by a VMEM byte budget (~4 MiB: big enough to amortize the
        ~0.35 us/step overhead and run near HBM roofline, small enough that double
        buffering + temporaries fit v7x's 64 MiB physical / raised scoped VMEM);
      * prefer an EVEN grid length so "parallel" shards across v7x's 2 TensorCores,
        as long as that does not shrink the block below half the budgeted size.
    """
    divisors = [d for d in range(1, bn + 1) if bn % d == 0]
    legal = [d for d in divisors if (d * t_out) % 8 == 0 or d == bn]
    bbytes = lambda d: d * t_out * in_row_bytes

    fitting = [d for d in legal if bbytes(d) <= max_block_bytes]
    if not fitting:
        fitting = [min(legal)]
    best = max(fitting)

    if bn > 1 and (bn // best) % 2 == 1:
        even = [d for d in fitting
                if (bn // d) % 2 == 0
                and (2 * bbytes(d) >= bbytes(best) or bbytes(best) <= (1 << 20))]
        if even:
            best = max(even)
    return best


def dance_downsample(x, weight, bias, *, rate=2, bn_tile=None):
    """x: (b, n, t, c); weight: (C_out, C_in, 3) (PyTorch Conv1d layout); bias: (C_out,)."""
    b, n, t, c = x.shape
    c_out = weight.shape[0]
    # TODO(synk): rate == 1 or t not divisible by rate would need a halo/tail path; the
    # module's downsampling config (rate=2, even t) is what is implemented here.
    assert rate >= 2 and t % rate == 0, "kernel supports stride>=2 with t % rate == 0"
    t_out = t // rate                      # == (t + 2*1 - 3)//rate + 1 for this case
    bn = b * n
    m = bn * t_out

    # Free metadata reshape: (b, n, t, c) -> (bn*t_out, rate*c).  No padding copy.
    x2 = x.reshape(m, rate * c)

    # Fold all three taps into one matmul operand.
    # TODO(synk): if numerics allow, casting x2/w_cat to bf16 here would ~halve HBM
    # traffic (kernel is bandwidth-bound); kept f32 for exact parity with the module.
    w_cat = _build_folded_weight(weight, rate).astype(x.dtype)
    b2 = bias.reshape(1, c_out).astype(jnp.float32)

    itemsize = jnp.dtype(x.dtype).itemsize
    in_row_bytes = rate * c * itemsize
    if bn_tile is None:
        bn_tile = _pick_bn_tile(bn, t_out, in_row_bytes)
    assert bn % bn_tile == 0, "bn_tile must divide b*n (rows would be silently dropped)"
    m_tile = bn_tile * t_out
    grid = (bn // bn_tile,)

    # NOTE: the tap-0 roll + mask is only correct because every block starts at a local
    # j == 0 boundary (m_tile = bn_tile * t_out, whole (b*n) rows per block).  Any change
    # that splits t_out across grid steps needs a cross-block halo.
    mask = (jnp.arange(m_tile) % t_out != 0).astype(jnp.float32).reshape(m_tile, 1)

    # Raise the scoped-VMEM limit to cover double-buffered blocks + resident weights
    # + in-kernel f32 temporaries (capped well under v7x's 64 MiB physical VMEM).
    in_blk = m_tile * rate * c * itemsize
    out_blk = m_tile * c_out * itemsize
    w_bytes = (rate * c) * (2 * c_out) * itemsize
    tmp_bytes = 4 * m_tile * (2 * c_out) * 4
    vmem_limit = 2 * (in_blk + out_blk) + 2 * w_bytes + tmp_bytes + (2 << 20)
    vmem_limit = int(min(max(vmem_limit, 16 << 20), 48 << 20))

    out = pl.pallas_call(
        _conv1d_k3_strided_kernel,
        out_shape=jax.ShapeDtypeStruct((m, c_out), x.dtype),
        grid_spec=pltpu.PrefetchScalarGridSpec(
            num_scalar_prefetch=0,
            grid=grid,
            in_specs=[
                pl.BlockSpec((m_tile, rate * c), lambda i: (i, 0)),
                pl.BlockSpec((rate * c, 2 * c_out), lambda i: (0, 0)),  # resident weights
                pl.BlockSpec((1, c_out), lambda i: (0, 0)),             # resident bias
                pl.BlockSpec((m_tile, 1), lambda i: (0, 0)),            # resident j==0 mask
            ],
            out_specs=pl.BlockSpec((m_tile, c_out), lambda i: (i, 0)),
        ),
        compiler_params=pltpu.CompilerParams(
            dimension_semantics=("parallel",),
            vmem_limit_bytes=vmem_limit),
    )(x2, w_cat, b2, mask)

    return out.reshape(b, n, t_out, c_out)


def _reference(x, weight, bias, *, rate=2):
    b, n, t, c = x.shape
    x_nct = jnp.transpose(x.reshape(b * n, t, c), (0, 2, 1))    # (BN, C, T)
    y = jax.lax.conv_general_dilated(
        x_nct, weight, window_strides=(rate,), padding=((1, 1),),
        dimension_numbers=("NCH", "OIH", "NCH"))
    y = y + bias[None, :, None]
    t_out = y.shape[-1]
    return jnp.transpose(y, (0, 2, 1)).reshape(b, n, t_out, c)


if __name__ == "__main__":
    # Small, module-consistent shapes: b=2, n=2, t=16, hidden_size=32, rate=2.
    b, n, t, hidden = 2, 2, 16, 32
    rate = 2

    key = jax.random.PRNGKey(0)
    kx, kw, kb = jax.random.split(key, 3)

    x = jax.random.normal(kx, (b, n, t, hidden), dtype=jnp.float32)

    # Deterministic Conv1d params, PyTorch-default-style uniform init.
    fan_in = hidden * 3
    bound = 1.0 / (fan_in ** 0.5)
    weight = jax.random.uniform(kw, (hidden, hidden, 3), jnp.float32, -bound, bound)
    bias = jax.random.uniform(kb, (hidden,), jnp.float32, -bound, bound)

    y = dance_downsample(x, weight, bias, rate=rate)
    y = jax.block_until_ready(y)

    y_ref = _reference(x, weight, bias, rate=rate)
    assert y.shape == (b, n, t // rate, hidden), y.shape
    assert jnp.allclose(y, y_ref, atol=1e-4, rtol=1e-4), float(jnp.max(jnp.abs(y - y_ref)))

    print("KERNEL_OK")
</pallas_src>

<mosaic_0001>
module attributes {stable_mosaic.version = 11 : i64} {
  func.func @_conv1d_k3_strided_kernel(%arg0: i32, %arg1: memref<16x64xf32, #tpu.memory_space<vmem>>, %arg2: memref<64x64xf32, #tpu.memory_space<vmem>>, %arg3: memref<1x32xf32, #tpu.memory_space<vmem>>, %arg4: memref<16x1xf32, #tpu.memory_space<vmem>>, %arg5: memref<16x32xf32, #tpu.memory_space<vmem>>) attributes {dimension_semantics = [#tpu.dimension_semantics<parallel>], iteration_bounds = array<i64: 2>, scalar_prefetch = 0 : i64, scratch_operands = 0 : i64, tpu.core_type = #tpu.core_type<tc>, window_params = [{transform_indices = @transform_0, window_bounds = array<i64: 16, 64>}, {pipeline_mode = #tpu.pipeline_mode<synchronous>, transform_indices = @transform_1, window_bounds = array<i64: 64, 64>}, {pipeline_mode = #tpu.pipeline_mode<synchronous>, transform_indices = @transform_2, window_bounds = array<i64: 1, 32>}, {pipeline_mode = #tpu.pipeline_mode<synchronous>, transform_indices = @transform_3, window_bounds = array<i64: 16, 1>}, {transform_indices = @transform_4, window_bounds = array<i64: 16, 32>}]} {
    %c0 = arith.constant 0 : index
    %c0_0 = arith.constant 0 : index
    %0 = vector.load %arg1[%c0, %c0_0] : memref<16x64xf32, #tpu.memory_space<vmem>>, vector<16x64xf32>
    %c0_1 = arith.constant 0 : index
    %c0_2 = arith.constant 0 : index
    %1 = vector.load %arg2[%c0_1, %c0_2] : memref<64x64xf32, #tpu.memory_space<vmem>>, vector<64x64xf32>
    %cst = arith.constant dense<0.000000e+00> : vector<16x64xf32>
    %2 = tpu.matmul %0, %1, %cst {dimension_numbers = #tpu.dot_dimension_numbers<[1], [0], [0], [1], [0, 0, 1, 1], [], []>} : vector<16x64xf32>, vector<64x64xf32>, vector<16x64xf32> -> vector<16x64xf32>
    %3 = vector.extract_strided_slice %2 {offsets = [0, 0], sizes = [16, 32], strides = [1, 1]} : vector<16x64xf32> to vector<16x32xf32>
    %4 = vector.extract_strided_slice %2 {offsets = [0, 32], sizes = [16, 32], strides = [1, 1]} : vector<16x64xf32> to vector<16x32xf32>
    %c1_i32 = arith.constant 1 : i32
    %5 = tpu.dynamic_rotate %4 by %c1_i32 dim 0 : vector<16x32xf32>, i32 -> vector<16x32xf32>
    %c0_3 = arith.constant 0 : index
    %c0_4 = arith.constant 0 : index
    %6 = vector.load %arg4[%c0_3, %c0_4] : memref<16x1xf32, #tpu.memory_space<vmem>>, vector<16x1xf32>
    %7 = vector.broadcast %6 : vector<16x1xf32> to vector<16x32xf32>
    %8 = arith.mulf %5, %7 : vector<16x32xf32>
    %9 = arith.addf %3, %8 : vector<16x32xf32>
    %c0_5 = arith.constant 0 : index
    %c0_6 = arith.constant 0 : index
    %10 = vector.load %arg3[%c0_5, %c0_6] : memref<1x32xf32, #tpu.memory_space<vmem>>, vector<1x32xf32>
    %11 = vector.broadcast %10 : vector<1x32xf32> to vector<16x32xf32>
    %12 = arith.addf %9, %11 : vector<16x32xf32>
    %c0_7 = arith.constant 0 : index
    %c0_8 = arith.constant 0 : index
    %13 = vector.load %arg5[%c0_7, %c0_8] : memref<16x32xf32, #tpu.memory_space<vmem>>, vector<16x32xf32>
    tpu.vector_store %arg5[%c0_7, %c0_8], %12 {strides = array<i32>} : memref<16x32xf32, #tpu.memory_space<vmem>>, vector<16x32xf32>,
    return
  }
  func.func @transform_0(%arg0: i32) -> (i32, i32) {
    %c0_i32 = arith.constant 0 : i32
    %c0_i32_0 = arith.constant 0 : i32
    return %arg0, %c0_i32 : i32, i32
  }
  func.func @transform_1(%arg0: i32) -> (i32, i32) {
    %c0_i32 = arith.constant 0 : i32
    %c0_i32_0 = arith.constant 0 : i32
    %c0_i32_1 = arith.constant 0 : i32
    return %c0_i32, %c0_i32_0 : i32, i32
  }
  func.func @transform_2(%arg0: i32) -> (i32, i32) {
    %c0_i32 = arith.constant 0 : i32
    %c0_i32_0 = arith.constant 0 : i32
    %c0_i32_1 = arith.constant 0 : i32
    return %c0_i32, %c0_i32_0 : i32, i32
  }
  func.func @transform_3(%arg0: i32) -> (i32, i32) {
    %c0_i32 = arith.constant 0 : i32
    %c0_i32_0 = arith.constant 0 : i32
    %c0_i32_1 = arith.constant 0 : i32
    return %c0_i32, %c0_i32_0 : i32, i32
  }
  func.func @transform_4(%arg0: i32) -> (i32, i32) {
    %c0_i32 = arith.constant 0 : i32
    %c0_i32_0 = arith.constant 0 : i32
    return %arg0, %c0_i32 : i32, i32
  }
}

</mosaic_0001>

<llo_original>
// kernel: tpu_custom_call.1
$region0: #{tpu_custom_call.1}
  #allocation0 [shape = 'u32[]', space=smem, size = 0x4, offset = 0x4, fixed_abs, tag = 'smem constant byte address 0x4 - core index']
  #allocation1 [shape = 'u32[144,128]{1,0:T(1,128)}', space=vmem, size = 0x12000, scoped, tag = 'internal scratch']
  %s0 = inlined_call_operand.hbm [shape: f32[32,64], index: 0, kind: input, shape index: {}]
  %s1 = inlined_call_operand.hbm [shape: f32[64,64], index: 1, kind: input, shape index: {}]
  %s2 = inlined_call_operand.vmem [shape: f32[1,32], index: 2, kind: input, shape index: {}]
  %s3 = inlined_call_operand.vmem [shape: f32[16,1], index: 3, kind: input, shape index: {}]
  %s4 = inlined_call_operand.hbm [shape: f32[32,32], index: 4, kind: output, shape index: {}]
  %s5 = sld [smem:[#allocation0]]
  $region57: #{tpu_custom_call.1} parent=0
    _
  %s7 = ssub.s32 1, %s5
  %s8 = scalar_select 0, %s7, %s5
  $region1: #{tpu_custom_call.1} parent=0
    #allocation2 [shape = 'u8[16384]{0}', space=vmem, size = 0x4000, scoped, tag = 'input window, operand 0']
    #allocation3 [shape = 's32[2]{0}', space=sflag, size = 0x8, scoped, tag = 'scoped memory for tpu_custom_call.1']
    #allocation4 [shape = 's32[2]{0}', space=sflag, size = 0x8, scoped, tag = 'scoped memory for tpu_custom_call.1']
    #allocation5 [shape = 'u8[32768]{0}', space=vmem, size = 0x8000, scoped, tag = 'input window, operand 1, single buffered']
    #allocation6 [shape = 's32[1]{0}', space=sflag, size = 0x4, scoped, tag = 'scoped memory for tpu_custom_call.1']
    #allocation7 [shape = 'u8[16384]{0}', space=vmem, size = 0x4000, scoped, tag = 'output window, operand 0']
    %9 = vsyncpa [#allocation3], 0
    %s10 = scalar_lea.sflag [#allocation3], 1
    %11 = vsyncpa %s10, 0
    %12 = vsyncpa [#allocation6], 0
    %13 = vsyncpa [#allocation4], 0
    %s14 = scalar_lea.sflag [#allocation4], 1
    %15 = vsyncpa %s14, 0
    loop: start=0, step=1, limit=4
    $region2: #{tpu_custom_call.1} parent=1 // loop_pre_header
      _
    $region3: #{tpu_custom_call.1} parent=1 // loop_header
      %s17 = sphi 0, %s21
      %p18 = scmp.ge.s32.totalorder %s17, 4
      %s27 = sphi 0, %s29
      %s30 = sphi 0, %s27
      %s31 = sphi 0, %s30
      %s47 = sphi 0, %s31
      %s51 = sphi 0, %s51
      %s53 = sphi 0, %s51
      %s54 = sphi 0, %s53
      %s68 = sphi 0, %s54
      %s72 = sphi 0, %s72
      %s74 = sphi 0, %s72
      %s75 = sphi 0, %s74
      %s89 = sphi 0, %s75
      %s93 = sphi 0, %s93
      %s95 = sphi 0, %s93
      %s96 = sphi 0, %s95
      %s110 = sphi 0, %s96
      %s116 = sphi 0, %s118
      %s119 = sphi 0, %s116
      %s120 = sphi 0, %s119
      %s136 = sphi 0, %s120
    $region4: #{tpu_custom_call.1} parent=1 // loop_header_branch
      %20 = sbr.rel (%p18) target = $region8
    $region5: #{tpu_custom_call.1} parent=1 // loop_body
      %s22 = ssub.s32 %s17, 1
      %s23 = ssub.s32 %s17, 2
      %s24 = sadd.s32 %s17, 1
      %s25 = ssub.s32 %s17, %s24
      %p26 = scmp.eq.s32.totalorder %s25, 0
      %s28 = sadd.s32 %s27, 1
      %s29 = scalar_select %p26, %s27, %s28
      %p32 = pneg %p26
      %p33 = scmp.eq.s32.totalorder %s17, 1
      %p34 = por %p32, %p33
      %p35 = scmp.ne.s32.totalorder %s27, %s30
      %p36 = scmp.eq.s32.totalorder %s17, 0
      %p37 = por %p35, %p36
      %p38 = scmp.ne.s32.totalorder %s27, %s30
      %p39 = scmp.eq.s32.totalorder %s22, 1
      %p40 = por %p38, %p39
      %p41 = scmp.ne.s32.totalorder %s30, %s31
      %p42 = scmp.eq.s32.totalorder %s22, 0
      %p43 = por %p41, %p42
      %p44 = scmp.ne.s32.totalorder %s30, %s31
      %p45 = scmp.eq.s32.totalorder %s23, 1
      %p46 = por %p44, %p45
      %p48 = scmp.ne.s32.totalorder %s31, %s47
      %p49 = scmp.eq.s32.totalorder %s23, 0
      %p50 = por %p48, %p49
      %s52 = sadd.s32 %s51, 1
      %p55 = scmp.eq.s32.totalorder %s17, 1
      %p56 = scmp.ne.s32.totalorder %s51, %s53
      %p57 = scmp.eq.s32.totalorder %s17, 0
      %p58 = por %p56, %p57
      %p59 = scmp.ne.s32.totalorder %s51, %s53
      %p60 = scmp.eq.s32.totalorder %s22, 1
      %p61 = por %p59, %p60
      %p62 = scmp.ne.s32.totalorder %s53, %s54
      %p63 = scmp.eq.s32.totalorder %s22, 0
      %p64 = por %p62, %p63
      %p65 = scmp.ne.s32.totalorder %s53, %s54
      %p66 = scmp.eq.s32.totalorder %s23, 1
      %p67 = por %p65, %p66
      %p69 = scmp.ne.s32.totalorder %s54, %s68
      %p70 = scmp.eq.s32.totalorder %s23, 0
      %p71 = por %p69, %p70
      %s73 = sadd.s32 %s72, 1
      %p76 = scmp.eq.s32.totalorder %s17, 1
      %p77 = scmp.ne.s32.totalorder %s72, %s74
      %p78 = scmp.eq.s32.totalorder %s17, 0
      %p79 = por %p77, %p78
      %p80 = scmp.ne.s32.totalorder %s72, %s74
      %p81 = scmp.eq.s32.totalorder %s22, 1
      %p82 = por %p80, %p81
      %p83 = scmp.ne.s32.totalorder %s74, %s75
      %p84 = scmp.eq.s32.totalorder %s22, 0
      %p85 = por %p83, %p84
      %p86 = scmp.ne.s32.totalorder %s74, %s75
      %p87 = scmp.eq.s32.totalorder %s23, 1
      %p88 = por %p86, %p87
      %p90 = scmp.ne.s32.totalorder %s75, %s89
      %p91 = scmp.eq.s32.totalorder %s23, 0
      %p92 = por %p90, %p91
      %s94 = sadd.s32 %s93, 1
      %p97 = scmp.eq.s32.totalorder %s17, 1
      %p98 = scmp.ne.s32.totalorder %s93, %s95
      %p99 = scmp.eq.s32.totalorder %s17, 0
      %p100 = por %p98, %p99
      %p101 = scmp.ne.s32.totalorder %s93, %s95
      %p102 = scmp.eq.s32.totalorder %s22, 1
      %p103 = por %p101, %p102
      %p104 = scmp.ne.s32.totalorder %s95, %s96
      %p105 = scmp.eq.s32.totalorder %s22, 0
      %p106 = por %p104, %p105
      %p107 = scmp.ne.s32.totalorder %s95, %s96
      %p108 = scmp.eq.s32.totalorder %s23, 1
      %p109 = por %p107, %p108
      %p111 = scmp.ne.s32.totalorder %s96, %s110
      %p112 = scmp.eq.s32.totalorder %s23, 0
      %p113 = por %p111, %p112
      %s114 = ssub.s32 %s17, %s24
      %p115 = scmp.eq.s32.totalorder %s114, 0
      %s117 = sadd.s32 %s116, 1
      %s118 = scalar_select %p115, %s116, %s117
      %p121 = pneg %p115
      %p122 = scmp.eq.s32.totalorder %s17, 1
      %p123 = por %p121, %p122
      %p124 = scmp.ne.s32.totalorder %s116, %s119
      %p125 = scmp.eq.s32.totalorder %s17, 0
      %p126 = por %p124, %p125
      %p127 = scmp.ne.s32.totalorder %s116, %s119
      %p128 = scmp.eq.s32.totalorder %s22, 1
      %p129 = por %p127, %p128
      %p130 = scmp.ne.s32.totalorder %s119, %s120
      %p131 = scmp.eq.s32.totalorder %s22, 0
      %p132 = por %p130, %p131
      %p133 = scmp.ne.s32.totalorder %s119, %s120
      %p134 = scmp.eq.s32.totalorder %s23, 1
      %p135 = por %p133, %p134
      %p137 = scmp.ne.s32.totalorder %s120, %s136
      %p138 = scmp.eq.s32.totalorder %s23, 0
      %p139 = por %p137, %p138
      %p140 = scmp.le.s32.totalorder 1, %s17
      %p141 = scmp.lt.s32.totalorder %s17, 3
      %p142 = pnand %p140, %p141
      %p143 = pneg %p142
      // Predicated region
      $region9: #{tpu_custom_call.1} parent=5 // pred_check
        _
      $region10: #{tpu_custom_call.1} parent=5 // pred_check_branch
        %145 = sbr.rel (%p142) target = $region12
      $region11: #{tpu_custom_call.1} parent=5 // pred_region
        %s146 = ssub.s32 %s17, 1
        // Predicated region
        $region13: #{tpu_custom_call.1} parent=11 // pred_check
          %p147 = pneg %p64
        $region14: #{tpu_custom_call.1} parent=11 // pred_check_branch
          %149 = sbr.rel (%p147) target = $region16
        $region15: #{tpu_custom_call.1} parent=11 // pred_region
          %s151 = ssub.s32 1024, 1024
          %152 = vsyncadd [#allocation6], %s151
          %s153 = sshll.u32 [#allocation5], 4
          %s154 = int_to_ptr.vmem [resolvable:$true] %s153
          %159 = dma.hbm_to_vmem [thread:$0]  %s1, 1024, %s154, [#allocation6], 128, 128, 8
        $region16: #{tpu_custom_call.1} parent=11 // pred_fallthru
          _
        // Predicated region
        $region17: #{tpu_custom_call.1} parent=11 // pred_check
          %p160 = pneg %p85
        $region18: #{tpu_custom_call.1} parent=11 // pred_check_branch
          %162 = sbr.rel (%p160) target = $region20
        $region19: #{tpu_custom_call.1} parent=11 // pred_region
          _
        $region20: #{tpu_custom_call.1} parent=11 // pred_fallthru
          _
        // Predicated region
        $region21: #{tpu_custom_call.1} parent=11 // pred_check
          %p163 = pneg %p106
        $region22: #{tpu_custom_call.1} parent=11 // pred_check_branch
          %165 = sbr.rel (%p163) target = $region24
        $region23: #{tpu_custom_call.1} parent=11 // pred_region
          _
        $region24: #{tpu_custom_call.1} parent=11 // pred_fallthru
          _
      $region12: #{tpu_custom_call.1} parent=5 // pred_fallthru
        _
      %p166 = scmp.lt.s32.totalorder %s17, 2
      // Predicated region
      $region25: #{tpu_custom_call.1} parent=5 // pred_check
        %p167 = pneg %p166
      $region26: #{tpu_custom_call.1} parent=5 // pred_check_branch
        %169 = sbr.rel (%p167) target = $region28
      $region27: #{tpu_custom_call.1} parent=5 // pred_region
        // Predicated region
        $region29: #{tpu_custom_call.1} parent=27 // pred_check
          %p170 = pneg %p37
        $region30: #{tpu_custom_call.1} parent=27 // pred_check_branch
          %172 = sbr.rel (%p170) target = $region32
        $region31: #{tpu_custom_call.1} parent=27 // pred_region
          %s173 = sand.u32 %s27, 1
          %s174 = scalar_lea.sflag [#allocation3], %s173
          %s175 = sand.u32 %s27, 1
          %s176 = smul.addr %s175, 16
          %s177 = scalar_lea.vmem [#allocation2], %s176
          %s178 = smul.u32 2, %s17
          %s180 = ssub.s32 256, 256
          %181 = vsyncadd %s174, %s180
          %s182 = smul.addr %s178, 128
          %s183 = scalar_lea.hbm %s0, %s182
          %s184 = sshll.u32 %s177, 4
          %s185 = int_to_ptr.vmem [resolvable:$true] %s184
          %190 = dma.hbm_to_vmem [thread:$0]  %s183, 256, %s185, %s174, 128, 128, 8
        $region32: #{tpu_custom_call.1} parent=27 // pred_fallthru
          _
      $region28: #{tpu_custom_call.1} parent=5 // pred_fallthru
        _
      %p191 = scmp.le.s32.totalorder 1, %s17
      %p192 = scmp.lt.s32.totalorder %s17, 3
      %p193 = pnand %p191, %p192
      %p194 = pneg %p193
      // Predicated region
      $region33: #{tpu_custom_call.1} parent=5 // pred_check
        _
      $region34: #{tpu_custom_call.1} parent=5 // pred_check_branch
        %196 = sbr.rel (%p193) target = $region36
      $region35: #{tpu_custom_call.1} parent=5 // pred_region
        %s197 = ssub.s32 %s17, 1
        %s198 = sand.u32 %s30, 1
        %s199 = scalar_lea.sflag [#allocation3], %s198
        %s200 = sand.u32 %s30, 1
        %s201 = smul.addr %s200, 16
        %s202 = scalar_lea.vmem [#allocation2], %s201
        // Predicated region
        $region37: #{tpu_custom_call.1} parent=35 // pred_check
          %p203 = pneg %p43
        $region38: #{tpu_custom_call.1} parent=35 // pred_check_branch
          %205 = sbr.rel (%p203) target = $region40
        $region39: #{tpu_custom_call.1} parent=35 // pred_region
          %206 = dma.done %s199, 256
        $region40: #{tpu_custom_call.1} parent=35 // pred_fallthru
          _
        // Predicated region
        $region41: #{tpu_custom_call.1} parent=35 // pred_check
          %p207 = pneg %p64
        $region42: #{tpu_custom_call.1} parent=35 // pred_check_branch
          %209 = sbr.rel (%p207) target = $region44
        $region43: #{tpu_custom_call.1} parent=35 // pred_region
          %210 = dma.done [#allocation6], 1024
        $region44: #{tpu_custom_call.1} parent=35 // pred_fallthru
          _
        %s211 = sand.u32 %s30, 1
        %s212 = scalar_lea.sflag [#allocation3], %s211
        %s213 = sand.u32 %s30, 1
        %s214 = smul.addr %s213, 16
        %s215 = scalar_lea.vmem [#allocation2], %s214
        %p216 = pneg %p43
        %p217 = pneg %p40
        %p218 = pneg %p64
        %p219 = pneg %p61
        %p220 = pneg %p85
        %p221 = pneg %p82
        %p222 = pneg %p106
        %p223 = pneg %p103
        %p224 = pneg %p132
        %p225 = pneg %p129
        %s226 = sand.u32 %s119, 1
        %s227 = scalar_lea.sflag [#allocation4], %s226
        %s228 = sand.u32 %s119, 1
        %s229 = smul.addr %s228, 16
        %s230 = scalar_lea.vmem [#allocation7], %s229
        %s231 = smul.u32 2, %s22
        %s232 = smul.u32 2, %s22
        %v233 = vld [vmem:[%s202] sm:$0xff]
        %v234 = vld [vmem:[%s202 + $0x8] sm:$0xff]
        %v235 = vld [vmem:[#allocation5] sm:$0xff]
        %v236 = vld [vmem:[#allocation5 + $0x8] sm:$0xff]
        %v237 = vld [vmem:[#allocation5 + $0x10] sm:$0xff]
        %v238 = vld [vmem:[#allocation5 + $0x18] sm:$0xff]
        %v239 = vld [vmem:[#allocation5 + $0x20] sm:$0xff]
        %v240 = vld [vmem:[#allocation5 + $0x28] sm:$0xff]
        %v241 = vld [vmem:[#allocation5 + $0x30] sm:$0xff]
        %v242 = vld [vmem:[#allocation5 + $0x38] sm:$0xff]
        %vm243 = vcmask 523264
        %v245 = vsel %vm243, %v233, 0
        %v248 = vsel %vm243, %v234, 0
        %250 = vmatprep.subr.mxu0 0.0
        %251 = vmatpush1.msra.mxu0 %v235
        %252 = vmatprep.subr.mxu0 0.0
        %253 = vmatpush1.msra.mxu0 %v236
        %254 = vmatprep.subr.mxu0 0.0
        %255 = vmatpush1.msra.mxu0 %v237
        %256 = vmatprep.subr.mxu0 0.0
        %257 = vmatpush1.msra.mxu0 %v238
        %258 = vmatprep.subr.mxu0 0.0
        %259 = vmatpush1.msra.mxu0 %v239
        %260 = vmatprep.subr.mxu0 0.0
        %261 = vmatpush1.msra.mxu0 %v240
        %262 = vmatprep.subr.mxu0 0.0
        %263 = vmatpush1.msra.mxu0 %v241
        %264 = vmatprep.subr.mxu0 0.0
        %265 = vmatpush1.msra.mxu0 %v242
        %266 = vmatprep.subr.mxu0 0.0
        %267 = vmatpush1.msra.mxu0 0.0
        %268 = vmatprep.subr.mxu0 0.0
        %269 = vmatpush1.msra.mxu0 0.0
        %270 = vmatprep.subr.mxu0 0.0
        %271 = vmatpush1.msra.mxu0 0.0
        %272 = vmatprep.subr.mxu0 0.0
        %273 = vmatpush1.msra.mxu0 0.0
        %274 = vmatprep.subr.mxu0 0.0
        %275 = vmatpush1.msra.mxu0 0.0
        %276 = vmatprep.subr.mxu0 0.0
        %277 = vmatpush1.msra.mxu0 0.0
        %278 = vmatprep.subr.mxu0 0.0
        %279 = vmatpush1.msra.mxu0 0.0
        %280 = vmatprep.subr.mxu0 0.0
        %281 = vmatpush1.msra.mxu0 0.0
        %282 = vmatprep.subr.mxu0 0.0
        %283 = vmatpush1.msra.mxu0 0.0
        %284 = vmatprep.subr.mxu0 0.0
        %285 = vmatpush1.msra.mxu0 0.0
        %286 = vmatprep.subr.mxu0 0.0
        %287 = vmatpush1.msra.mxu0 0.0
        %288 = vmatprep.subr.mxu0 0.0
        %289 = vmatpush1.msra.mxu0 0.0
        %290 = vmatprep.subr.mxu0 0.0
        %291 = vmatpush1.msra.mxu0 0.0
        %292 = vmatprep.subr.mxu0 0.0
        %293 = vmatpush1.msra.mxu0 0.0
        %294 = vmatprep.subr.mxu0 0.0
        %295 = vmatpush1.msra.mxu0 0.0
        %296 = vmatprep.subr.mxu0 0.0
        %297 = vmatpush1.msra.mxu0 0.0
        %298 = vmatprep.subr.mxu0 0.0
        %299 = vmatpush1.msra.mxu0 0.0
        %300 = vmatprep.subr.mxu0 0.0
        %301 = vmatpush1.msra.mxu0 0.0
        %302 = vmatprep.subr.mxu0 0.0
        %303 = vmatpush1.msra.mxu0 0.0
        %304 = vmatprep.subr.mxu0 0.0
        %305 = vmatpush1.msra.mxu0 0.0
        %306 = vmatprep.subr.mxu0 0.0
        %307 = vmatpush1.msra.mxu0 0.0
        %308 = vmatprep.subr.mxu0 0.0
        %309 = vmatpush1.msra.mxu0 0.0
        %310 = vmatprep.subr.mxu0 0.0
        %311 = vmatpush1.msra.mxu0 0.0
        %312 = vmatprep.subr.mxu0 0.0
        %313 = vmatpush1.msra.mxu0 0.0
        %314 = vmatprep.mubr.f32.mxu0 0.0
        %315 = vmatmul.mubr.f32.gmra.mrb[0].mxu0 %v245
        %v316 = vpop.f32.mrb[0].mxu0
        %v317 = vadd.f32 0.0, %v316
        %v318 = vpop.f32.mrb[0].mxu0
        %319 = vmatprep.mubr.f32.mxu0 0.0
        %320 = vmatmul.mubr.f32.gmra.mrb[0].mxu0 %v248
        %v321 = vpop.f32.mrb[0].mxu0
        %v322 = vadd.f32 0.0, %v321
        %v323 = vpop.f32.mrb[0].mxu0
        %324 = vdwg.mxu0
        %327 = vrot.lane.b32.xlu0 %v317, 96
        %v328 = vpop.permute.xlu0 %327
        %329 = vrot.lane.b32.xlu0 %v322, 96
        %v330 = vpop.permute.xlu0 %329
        %v333 = vrot.slane %v328, 7
        %v334 = vrot.slane %v330, 7
        %v335 = vlaneseq
        %v336 = vshrl.u32 %v335, 7
        %vm337 = vcmp.lt.s32.totalorder %v336, 1
        %v338 = vsel %vm337, %v333, %v334
        %v339 = vsel %vm337, %v334, %v333
        %v340 = vld [vmem:[%s3] sm:$0xff]
        %v341 = vld [vmem:[%s3 + $0x8] sm:$0xff]
        %343 = vset.pattern.permute.xlu0 0
        %344 = vperm.xlu0 %343, %v340
        %v345 = vpop.permute.xlu0 %344
        %348 = vset.pattern.permute.xlu0 0
        %349 = vperm.xlu0 %348, %v341
        %v350 = vpop.permute.xlu0 %349
        %v352 = vmul.f32 %v339, %v345
        %v353 = vmul.f32 %v338, %v350
        %v354 = vadd.f32 %v317, %v352
        %v355 = vadd.f32 %v322, %v353
        %v356 = vld [vmem:[%s2] sm:$0x1]
        %v358 = vlaneseq
        %v359 = vshrl.u32 %v358, 7
        %v360 = vsub.s32 0, %v359
        %v361 = vrot.slane %v356, %v360
        %v363 = vadd.f32 %v354, %v361
        %v364 = vadd.f32 %v355, %v361
        %vm365 = vcmask 261120
        %366 = vst.msk [vmem:[%s230] sm:$0xff] %vm365, %v363
        %367 = vst.msk [vmem:[%s230 + $0x8] sm:$0xff] %vm365, %v364
        %s368 = sand.u32 %s119, 1
        %s369 = scalar_lea.sflag [#allocation4], %s368
        %s370 = sand.u32 %s119, 1
        %s371 = smul.addr %s370, 16
        %s372 = scalar_lea.vmem [#allocation7], %s371
        // Predicated region
        $region45: #{tpu_custom_call.1} parent=35 // pred_check
          %p373 = pneg %p129
        $region46: #{tpu_custom_call.1} parent=35 // pred_check_branch
          %375 = sbr.rel (%p373) target = $region48
        $region47: #{tpu_custom_call.1} parent=35 // pred_region
          %s376 = smul.u32 2, %s22
          %s378 = ssub.s32 256, 256
          %379 = vsyncadd %s369, %s378
          %s380 = smul.addr %s376, 128
          %s381 = scalar_lea.hbm %s4, %s380
          %s382 = sshll.u32 %s372, 4
          %s383 = int_to_ptr.vmem [resolvable:$true] %s382
          %388 = dma.vmem_to_hbm [thread:$0]  %s383, 256, %s381, %s369, 128, 128, 8
        $region48: #{tpu_custom_call.1} parent=35 // pred_fallthru
          _
      $region36: #{tpu_custom_call.1} parent=5 // pred_fallthru
        _
      %p389 = scmp.le.s32.totalorder 2, %s17
      // Predicated region
      $region49: #{tpu_custom_call.1} parent=5 // pred_check
        %p390 = pneg %p389
      $region50: #{tpu_custom_call.1} parent=5 // pred_check_branch
        %392 = sbr.rel (%p390) target = $region52
      $region51: #{tpu_custom_call.1} parent=5 // pred_region
        %s393 = ssub.s32 %s17, 2
        // Predicated region
        $region53: #{tpu_custom_call.1} parent=51 // pred_check
          %p394 = pneg %p135
        $region54: #{tpu_custom_call.1} parent=51 // pred_check_branch
          %396 = sbr.rel (%p394) target = $region56
        $region55: #{tpu_custom_call.1} parent=51 // pred_region
          %s397 = sand.u32 %s120, 1
          %s398 = scalar_lea.sflag [#allocation4], %s397
          %s399 = sand.u32 %s120, 1
          %s400 = smul.addr %s399, 16
          %s401 = scalar_lea.vmem [#allocation7], %s400
          %402 = dma.done %s398, 256
        $region56: #{tpu_custom_call.1} parent=51 // pred_fallthru
          _
      $region52: #{tpu_custom_call.1} parent=5 // pred_fallthru
        _
    $region6: #{tpu_custom_call.1} parent=1 // loop_footer
      %s21 = sadd.s32 1, %s17
    $region7: #{tpu_custom_call.1} parent=1 // loop_footer_branch
      %16 = sbr.rel target = $region3
    $region8: #{tpu_custom_call.1} parent=1 // loop_exit
      _
    %403 = vsyncpa [#allocation3], 1
    %s404 = scalar_lea.sflag [#allocation3], 1
    %405 = vsyncpa %s404, 1
    %406 = vsyncpa [#allocation6], 1
    %407 = vsyncpa [#allocation4], 1
    %s408 = scalar_lea.sflag [#allocation4], 1
    %409 = vsyncpa %s408, 1

</llo_original>
